<compile_context>
chip_gen: v6e
topology: v6e:2x2x1
jax: 0.10.0
libtpu: 0.0.40
codegen_flags: <defaults>
</compile_context>

<pallas_src>
import jax
import jax.numpy as jnp
from jax.experimental import pallas as pl
from jax.experimental.pallas import tpu as pltpu


def _round_up(x: int, m: int) -> int:
    return ((x + m - 1) // m) * m


# ----------------------------------------------------------------------------- kernels
def _logreg_kernel(x_ref, w_ref, o_ref, acc_ref):
    # x_ref: (TB, TK), w_ref: (1, TK) pre-sampled weight row, o_ref: (TB, 1),
    # acc_ref: (TB, 1) f32 accumulator (persists across the feature grid axis).
    k = pl.program_id(1)

    @pl.when(k == 0)
    def _():
        acc_ref[...] = jnp.zeros_like(acc_ref)

    x = x_ref[...].astype(jnp.float32)          # (TB, TK)
    w = w_ref[...].astype(jnp.float32)          # (1, TK) -> broadcast over rows
    acc_ref[...] += jnp.sum(x * w, axis=-1, keepdims=True)

    @pl.when(k == pl.num_programs(1) - 1)
    def _():
        z = acc_ref[...]
        # sigmoid(z) = 1 / (1 + exp(-z)); exp on EUP, exact reciprocal keeps tight tol.
        o_ref[...] = pl.reciprocal(1.0 + jnp.exp(-z)).astype(o_ref.dtype)


def _fused_vi_kernel(x_ref, mu_ref, ls_ref, eps_ref, o_ref, acc_ref):
    # Fused BayesLinear sample + logistic regression.  Zero-padded columns are safe:
    # mu=0, eps=0  =>  w = 0 + exp(0) * 0 = 0.
    k = pl.program_id(1)

    @pl.when(k == 0)
    def _():
        acc_ref[...] = jnp.zeros_like(acc_ref)

    w = (mu_ref[...].astype(jnp.float32)
         + jnp.exp(ls_ref[...].astype(jnp.float32)) * eps_ref[...].astype(jnp.float32))
    x = x_ref[...].astype(jnp.float32)
    acc_ref[...] += jnp.sum(x * w, axis=-1, keepdims=True)

    @pl.when(k == pl.num_programs(1) - 1)
    def _():
        z = acc_ref[...]
        o_ref[...] = pl.reciprocal(1.0 + jnp.exp(-z)).astype(o_ref.dtype)


# ----------------------------------------------------------------------------- wrapper
def _run_tiled(kernel, x, row_args, *, block_b=None, block_k=2048):
    """Launch `kernel` over x:(batch,F) and a list of (1,F) row arrays -> (batch,1) f32."""
    batch, f = x.shape
    itemsize = x.dtype.itemsize

    # Feature tiles: balanced to minimize zero padding, 128-aligned (or the full dim).
    if f <= block_k:
        tk = f
    else:
        n_k = -(-f // block_k)
        tk = _round_up(-(-f // n_k), 128)

    # Batch tiles: ~4 MiB x tile; multiple of 8 (or the full extent).
    if block_b is None:
        tb_max = (4 * 1024 * 1024) // max(tk * itemsize, 1)
        tb_max = max(8, min(4096, (tb_max // 8) * 8))
    else:
        tb_max = max(8, block_b)
    if batch <= tb_max:
        tb = batch
    else:
        n_b = -(-batch // tb_max)
        tb = _round_up(-(-batch // n_b), 8)

    pb = _round_up(batch, tb)
    pk = _round_up(f, tk)

    x_p = x if (pb, pk) == (batch, f) else jnp.pad(x, ((0, pb - batch), (0, pk - f)))
    rows_p = [r if pk == f else jnp.pad(r, ((0, 0), (0, pk - f))) for r in row_args]

    grid = (pb // tb, pk // tk)
    bytes_accessed = (
        x_p.size * itemsize
        + sum(int(r.size) * r.dtype.itemsize for r in rows_p) * grid[0]
        + pb * 4
    )

    row_spec = pl.BlockSpec((1, tk), lambda i, k: (0, k))
    out = pl.pallas_call(
        kernel,
        out_shape=jax.ShapeDtypeStruct((pb, 1), jnp.float32),
        grid=grid,
        in_specs=[pl.BlockSpec((tb, tk), lambda i, k: (i, k))] + [row_spec] * len(rows_p),
        out_specs=pl.BlockSpec((tb, 1), lambda i, k: (i, 0)),
        scratch_shapes=[pltpu.VMEM((tb, 1), jnp.float32)],
        compiler_params=pltpu.CompilerParams(
            dimension_semantics=("parallel", "arbitrary"),
            vmem_limit_bytes=48 * 1024 * 1024,
        ),
        cost_estimate=pl.CostEstimate(
            flops=2 * pb * pk,
            transcendentals=int(pb + grid[0] * pk),
            bytes_accessed=int(bytes_accessed),
        ),
    )(x_p, *rows_p)
    return out[:batch]


def bayes_logreg_forward(x, weight, *, use_pallas=None, block_b=None, block_k=2048):
    """sigmoid(x @ weight^T) with a pre-sampled weight.  x: (B, F), weight: (1, F)."""
    batch, f = x.shape
    weight = weight.reshape(1, f)
    if use_pallas is None:
        use_pallas = batch * f >= 64 * 1024     # tiny problems: launch overhead dominates
    if not use_pallas:
        z = jnp.dot(x.astype(jnp.float32), weight.astype(jnp.float32).T)
        return jax.nn.sigmoid(z)
    return _run_tiled(_logreg_kernel, x, [weight], block_b=block_b, block_k=block_k)


def sample_bayes_linear_weight(weight_mu, weight_log_sigma, key):
    """BayesLinear reparameterized weight sample: mu + exp(log_sigma) * eps."""
    eps = jax.random.normal(key, weight_mu.shape, dtype=weight_mu.dtype)
    return weight_mu + jnp.exp(weight_log_sigma) * eps


def bayesian_logreg_vi_forward(x, weight_mu, weight_log_sigma, key, *,
                               use_pallas=None, block_b=None, block_k=2048):
    """Full module forward: sample W from the variational posterior (in-kernel) and
    return sigmoid(x @ W^T)."""
    batch, f = x.shape
    mu = weight_mu.reshape(1, f)
    ls = weight_log_sigma.reshape(1, f)
    eps = jax.random.normal(key, (1, f), dtype=jnp.float32)
    if use_pallas is None:
        use_pallas = batch * f >= 64 * 1024
    if not use_pallas:
        w = mu.astype(jnp.float32) + jnp.exp(ls.astype(jnp.float32)) * eps
        return jax.nn.sigmoid(jnp.dot(x.astype(jnp.float32), w.T))
    return _run_tiled(_fused_vi_kernel, x, [mu, ls, eps],
                      block_b=block_b, block_k=block_k)


if __name__ == "__main__":
    key = jax.random.PRNGKey(0)
    k_x, k_mu, k_eps, k_x2, k_mu2, k_ls2, k_eps2 = jax.random.split(key, 7)

    # Small shapes consistent with the module: batch=8, in_features=32.
    batch, in_features = 8, 32
    x = jax.random.normal(k_x, (batch, in_features), dtype=jnp.float32)
    bound = float(1.0 / (in_features ** 0.5))
    weight_mu = jax.random.uniform(
        k_mu, (1, in_features), jnp.float32, minval=-bound, maxval=bound
    )
    weight_log_sigma = jnp.full((1, in_features), -5.0, dtype=jnp.float32)

    # Full module forward (W sampled inside the kernel), forced through Pallas.
    out = jax.block_until_ready(
        bayesian_logreg_vi_forward(x, weight_mu, weight_log_sigma, k_eps, use_pallas=True)
    )
    eps = jax.random.normal(k_eps, (1, in_features), dtype=jnp.float32)
    w_ref = weight_mu + jnp.exp(weight_log_sigma) * eps
    ref = jax.nn.sigmoid(x @ w_ref.T)
    assert out.shape == (batch, 1)
    assert jnp.allclose(out, ref, atol=1e-5, rtol=1e-5), float(jnp.max(jnp.abs(out - ref)))

    # Pre-sampled-weight path (same math, non-fused kernel), also forced through Pallas.
    out_w = jax.block_until_ready(bayes_logreg_forward(x, w_ref, use_pallas=True))
    assert jnp.allclose(out_w, ref, atol=1e-5, rtol=1e-5)

    # Larger check exercising batch tiling, balanced K tiling and remainder padding:
    # batch=1000 -> TB=504 (pb=1008), F=2304 -> TK=1152 (no feature padding), grid=(2, 2).
    b2, f2 = 1000, 2304
    x2 = jax.random.normal(k_x2, (b2, f2), dtype=jnp.float32)
    mu2 = jax.random.normal(k_mu2, (1, f2), dtype=jnp.float32) / jnp.sqrt(jnp.float32(f2))
    ls2 = -3.0 + 0.1 * jax.random.normal(k_ls2, (1, f2), dtype=jnp.float32)
    out2 = jax.block_until_ready(bayesian_logreg_vi_forward(x2, mu2, ls2, k_eps2))
    eps2 = jax.random.normal(k_eps2, (1, f2), dtype=jnp.float32)
    w2 = mu2 + jnp.exp(ls2) * eps2
    ref2 = jax.nn.sigmoid(x2 @ w2.T)
    assert out2.shape == (b2, 1)
    assert jnp.allclose(out2, ref2, atol=1e-4, rtol=1e-4), float(jnp.max(jnp.abs(out2 - ref2)))

    print("KERNEL_OK")
</pallas_src>

<mosaic_0001>
module attributes {stable_mosaic.version = 11 : i64} {
  func.func @_fused_vi_kernel(%arg0: i32, %arg1: i32, %arg2: memref<8x32xf32, #tpu.memory_space<vmem>>, %arg3: memref<1x32xf32, #tpu.memory_space<vmem>>, %arg4: memref<1x32xf32, #tpu.memory_space<vmem>>, %arg5: memref<1x32xf32, #tpu.memory_space<vmem>>, %arg6: memref<8x1xf32, #tpu.memory_space<vmem>>, %arg7: memref<8x1xf32, #tpu.memory_space<vmem>>) attributes {dimension_semantics = [#tpu.dimension_semantics<parallel>, #tpu.dimension_semantics<arbitrary>], iteration_bounds = array<i64: 1, 1>, scalar_prefetch = 0 : i64, scratch_operands = 1 : i64, tpu.core_type = #tpu.core_type<tc>, window_params = [{transform_indices = @transform_0, window_bounds = array<i64: 8, 32>}, {transform_indices = @transform_1, window_bounds = array<i64: 1, 32>}, {transform_indices = @transform_2, window_bounds = array<i64: 1, 32>}, {transform_indices = @transform_3, window_bounds = array<i64: 1, 32>}, {transform_indices = @transform_4, window_bounds = array<i64: 8, 1>}]} {
    %c0_i32 = arith.constant 0 : i32
    %0 = arith.cmpi eq, %arg1, %c0_i32 : i32
    %1 = arith.extui %0 : i1 to i32
    %c0_i32_0 = arith.constant 0 : i32
    %2 = arith.cmpi ne, %1, %c0_i32_0 : i32
    scf.if %2 {
      %cst_14 = arith.constant 0.000000e+00 : f32
      %20 = vector.broadcast %cst_14 : f32 to vector<8x1xf32>
      %c0_15 = arith.constant 0 : index
      %c0_16 = arith.constant 0 : index
      %21 = vector.load %arg7[%c0_15, %c0_16] : memref<8x1xf32, #tpu.memory_space<vmem>>, vector<8x1xf32>
      tpu.vector_store %arg7[%c0_15, %c0_16], %20 {strides = array<i32>} : memref<8x1xf32, #tpu.memory_space<vmem>>, vector<8x1xf32>,
    } else {
    }
    %c0 = arith.constant 0 : index
    %c0_1 = arith.constant 0 : index
    %3 = vector.load %arg3[%c0, %c0_1] : memref<1x32xf32, #tpu.memory_space<vmem>>, vector<1x32xf32>
    %c0_2 = arith.constant 0 : index
    %c0_3 = arith.constant 0 : index
    %4 = vector.load %arg4[%c0_2, %c0_3] : memref<1x32xf32, #tpu.memory_space<vmem>>, vector<1x32xf32>
    %5 = math.exp %4 : vector<1x32xf32>
    %c0_4 = arith.constant 0 : index
    %c0_5 = arith.constant 0 : index
    %6 = vector.load %arg5[%c0_4, %c0_5] : memref<1x32xf32, #tpu.memory_space<vmem>>, vector<1x32xf32>
    %7 = arith.mulf %5, %6 : vector<1x32xf32>
    %8 = arith.addf %3, %7 : vector<1x32xf32>
    %c0_6 = arith.constant 0 : index
    %c0_7 = arith.constant 0 : index
    %9 = vector.load %arg2[%c0_6, %c0_7] : memref<8x32xf32, #tpu.memory_space<vmem>>, vector<8x32xf32>
    %c0_8 = arith.constant 0 : index
    %c0_9 = arith.constant 0 : index
    %10 = vector.load %arg7[%c0_8, %c0_9] : memref<8x1xf32, #tpu.memory_space<vmem>>, vector<8x1xf32>
    %11 = vector.broadcast %8 : vector<1x32xf32> to vector<8x32xf32>
    %12 = arith.mulf %9, %11 : vector<8x32xf32>
    %cst = arith.constant dense<0.000000e+00> : vector<8xf32>
    %13 = vector.multi_reduction <add>, %12, %cst [1] : vector<8x32xf32> to vector<8xf32>
    %14 = vector.shape_cast %13 : vector<8xf32> to vector<8x1xf32>
    %15 = arith.addf %10, %14 : vector<8x1xf32>
    %c0_10 = arith.constant 0 : index
    %c0_11 = arith.constant 0 : index
    %16 = vector.load %arg7[%c0_10, %c0_11] : memref<8x1xf32, #tpu.memory_space<vmem>>, vector<8x1xf32>
    tpu.vector_store %arg7[%c0_10, %c0_11], %15 {strides = array<i32>} : memref<8x1xf32, #tpu.memory_space<vmem>>, vector<8x1xf32>,
    %c0_i32_12 = arith.constant 0 : i32
    %17 = arith.cmpi eq, %arg1, %c0_i32_12 : i32
    %18 = arith.extui %17 : i1 to i32
    %c0_i32_13 = arith.constant 0 : i32
    %19 = arith.cmpi ne, %18, %c0_i32_13 : i32
    scf.if %19 {
      %c0_14 = arith.constant 0 : index
      %c0_15 = arith.constant 0 : index
      %20 = vector.load %arg7[%c0_14, %c0_15] : memref<8x1xf32, #tpu.memory_space<vmem>>, vector<8x1xf32>
      %cst_16 = arith.constant 0.000000e+00 : f32
      %21 = vector.broadcast %cst_16 : f32 to vector<8x1xf32>
      %22 = arith.subf %21, %20 : vector<8x1xf32>
      %23 = math.exp %22 : vector<8x1xf32>
      %cst_17 = arith.constant 1.000000e+00 : f32
      %24 = vector.broadcast %cst_17 : f32 to vector<8x1xf32>
      %25 = arith.addf %24, %23 : vector<8x1xf32>
      %26 = tpu.reciprocal %25 : vector<8x1xf32> -> vector<8x1xf32>
      %c0_18 = arith.constant 0 : index
      %c0_19 = arith.constant 0 : index
      %27 = vector.load %arg6[%c0_18, %c0_19] : memref<8x1xf32, #tpu.memory_space<vmem>>, vector<8x1xf32>
      tpu.vector_store %arg6[%c0_18, %c0_19], %26 {strides = array<i32>} : memref<8x1xf32, #tpu.memory_space<vmem>>, vector<8x1xf32>,
    } else {
    }
    return
  }
  func.func @transform_0(%arg0: i32, %arg1: i32) -> (i32, i32) {
    %c0_i32 = arith.constant 0 : i32
    return %arg0, %arg1 : i32, i32
  }
  func.func @transform_1(%arg0: i32, %arg1: i32) -> (i32, i32) {
    %c0_i32 = arith.constant 0 : i32
    %c0_i32_0 = arith.constant 0 : i32
    return %c0_i32, %arg1 : i32, i32
  }
  func.func @transform_2(%arg0: i32, %arg1: i32) -> (i32, i32) {
    %c0_i32 = arith.constant 0 : i32
    %c0_i32_0 = arith.constant 0 : i32
    return %c0_i32, %arg1 : i32, i32
  }
  func.func @transform_3(%arg0: i32, %arg1: i32) -> (i32, i32) {
    %c0_i32 = arith.constant 0 : i32
    %c0_i32_0 = arith.constant 0 : i32
    return %c0_i32, %arg1 : i32, i32
  }
  func.func @transform_4(%arg0: i32, %arg1: i32) -> (i32, i32) {
    %c0_i32 = arith.constant 0 : i32
    %c0_i32_0 = arith.constant 0 : i32
    return %arg0, %c0_i32 : i32, i32
  }
}

</mosaic_0001>

<llo_original>
// kernel: tpu_custom_call.1
$region0: #{tpu_custom_call.1}
  #allocation0 [shape = 'u32[]', space=smem, size = 0x4, offset = 0x4, fixed_abs, tag = 'smem constant byte address 0x4 - core index']
  #allocation1 [shape = 'u32[144,128]{1,0:T(1,128)}', space=vmem, size = 0x12000, scoped, tag = 'internal scratch']
  #allocation2 [shape = 'f32[8,1]{1,0:T(8,128)}', space=vmem, size = 0x1000, scoped, tag = 'scratch operand']
  %s0 = inlined_call_operand.hbm [shape: f32[8,32], index: 0, kind: input, shape index: {}]
  %s1 = inlined_call_operand.vmem [shape: f32[1,32], index: 1, kind: input, shape index: {}]
  %s2 = inlined_call_operand.vmem [shape: f32[1,32], index: 2, kind: input, shape index: {}]
  %s3 = inlined_call_operand.vmem [shape: f32[1,32], index: 3, kind: input, shape index: {}]
  %s4 = inlined_call_operand.vmem [shape: f32[8,1], index: 4, kind: output, shape index: {}]
  %s5 = sld [smem:[#allocation0]]
  $region38: #{tpu_custom_call.1} parent=0
    _
  %s7 = ssub.s32 1, %s5
  %s8 = scalar_select 0, %s7, %s5
  $region1: #{tpu_custom_call.1} parent=0
    #allocation3 [shape = 'u8[4096]{0}', space=vmem, size = 0x1000, scoped, tag = 'input window, operand 0, single buffered']
    #allocation4 [shape = 's32[1]{0}', space=sflag, size = 0x4, scoped, tag = 'scoped memory for tpu_custom_call.1']
    %9 = vsyncpa [#allocation4], 0
    // Predicated region
    $region2: #{tpu_custom_call.1} parent=1 // pred_check
      _
    $region3: #{tpu_custom_call.1} parent=1 // pred_check_branch
      %11 = sbr.rel (0) target = $region5
    $region4: #{tpu_custom_call.1} parent=1 // pred_region
      %s13 = ssub.s32 128, 128
      %14 = vsyncadd [#allocation4], %s13
      %s16 = sshll.u32 [#allocation3], 4
      %s17 = int_to_ptr.vmem [resolvable:$true] %s16
      %19 = dma.hbm_to_vmem [thread:$0]  %s0, 128, %s17, [#allocation4]
    $region5: #{tpu_custom_call.1} parent=1 // pred_fallthru
      _
    // Predicated region
    $region6: #{tpu_custom_call.1} parent=1 // pred_check
      _
    $region7: #{tpu_custom_call.1} parent=1 // pred_check_branch
      %21 = sbr.rel (0) target = $region9
    $region8: #{tpu_custom_call.1} parent=1 // pred_region
      _
    $region9: #{tpu_custom_call.1} parent=1 // pred_fallthru
      _
    // Predicated region
    $region10: #{tpu_custom_call.1} parent=1 // pred_check
      _
    $region11: #{tpu_custom_call.1} parent=1 // pred_check_branch
      %23 = sbr.rel (0) target = $region13
    $region12: #{tpu_custom_call.1} parent=1 // pred_region
      _
    $region13: #{tpu_custom_call.1} parent=1 // pred_fallthru
      _
    // Predicated region
    $region14: #{tpu_custom_call.1} parent=1 // pred_check
      _
    $region15: #{tpu_custom_call.1} parent=1 // pred_check_branch
      %25 = sbr.rel (0) target = $region17
    $region16: #{tpu_custom_call.1} parent=1 // pred_region
      _
    $region17: #{tpu_custom_call.1} parent=1 // pred_fallthru
      _
    // Predicated region
    $region18: #{tpu_custom_call.1} parent=1 // pred_check
      _
    $region19: #{tpu_custom_call.1} parent=1 // pred_check_branch
      %27 = sbr.rel (0) target = $region21
    $region20: #{tpu_custom_call.1} parent=1 // pred_region
      %28 = dma.done [#allocation4], 128
    $region21: #{tpu_custom_call.1} parent=1 // pred_fallthru
      _
    %p29 = scmp.eq.s32.totalorder 0, 0
    // Predicated region
    $region22: #{tpu_custom_call.1} parent=1 // pred_check
      %p30 = pneg %p29
    $region23: #{tpu_custom_call.1} parent=1 // pred_check_branch
      %32 = sbr.rel (%p30) target = $region25
    $region24: #{tpu_custom_call.1} parent=1 // pred_region
      %vm33 = vcmask 7168
      %34 = vst.msk [vmem:[#allocation2] sm:$0xff] %vm33, 0.0
    $region25: #{tpu_custom_call.1} parent=1 // pred_fallthru
      _
    %v35 = vld [vmem:[%s1] sm:$0x1]
    %v36 = vld [vmem:[%s2] sm:$0x1]
    %v37 = vmul.f32 %v36, 1.442695
    %v38 = vpow.pop %v37
    %v39 = vld [vmem:[%s3] sm:$0x1]
    %v40 = vmul.f32 %v38, %v39
    %v41 = vadd.f32 %v35, %v40
    %v42 = vld [vmem:[#allocation3] sm:$0xff]
    %v43 = vld [vmem:[#allocation2] sm:$0xff]
    %v45 = vlaneseq
    %v46 = vshrl.u32 %v45, 7
    %v47 = vsub.s32 0, %v46
    %v48 = vrot.slane %v41, %v47
    %v50 = vmul.f32 %v42, %v48
    %vm51 = vcmask 261120
    %v52 = vsel %vm51, %v50, 0.0
    %53 = vadd.xlane.f32.xlu0 %v52
    %v54 = vpop.xlane.xlu0 %53
    %v55 = vadd.f32 %v43, %v54
    %vm56 = vcmask 7168
    %57 = vst.msk [vmem:[#allocation2] sm:$0xff] %vm56, %v55
    // Predicated region
    $region26: #{tpu_custom_call.1} parent=1 // pred_check
      %p58 = pneg %p29
    $region27: #{tpu_custom_call.1} parent=1 // pred_check_branch
      %60 = sbr.rel (%p58) target = $region29
    $region28: #{tpu_custom_call.1} parent=1 // pred_region
      %v61 = vld [vmem:[#allocation2] sm:$0xff]
      %v62 = vsub.f32 0.0, %v61
      %v63 = vmul.f32 %v62, 1.442695
      %v64 = vpow.pop %v63
      %v65 = vadd.f32 %v64, 1.0
      %v66 = vrcp.pop %v65
      %67 = vst.msk [vmem:[%s4] sm:$0xff] %vm56, %v66
    $region29: #{tpu_custom_call.1} parent=1 // pred_fallthru
      _
    // Predicated region
    $region30: #{tpu_custom_call.1} parent=1 // pred_check
      _
    $region31: #{tpu_custom_call.1} parent=1 // pred_check_branch
      %69 = sbr.rel (0) target = $region33
    $region32: #{tpu_custom_call.1} parent=1 // pred_region
      _
    $region33: #{tpu_custom_call.1} parent=1 // pred_fallthru
      _
    // Predicated region
    $region34: #{tpu_custom_call.1} parent=1 // pred_check
      _
    $region35: #{tpu_custom_call.1} parent=1 // pred_check_branch
      %71 = sbr.rel (0) target = $region37
    $region36: #{tpu_custom_call.1} parent=1 // pred_region
      _
    $region37: #{tpu_custom_call.1} parent=1 // pred_fallthru
      _
    %72 = vsyncpa [#allocation4], 1

</llo_original>
